<compile_context>
chip_gen: v7x
topology: tpu7x:2x2x1
jax: 0.10.0
libtpu: 0.0.40
codegen_flags: <defaults>
</compile_context>

<pallas_src>
import functools

import jax
import jax.numpy as jnp
from jax import lax
from jax.experimental import pallas as pl
from jax.experimental.pallas import tpu as pltpu


def _round_up(x, m):
    return ((x + m - 1) // m) * m


def _tpu_generation():
    """Best-effort TPU generation from device_kind (7=v7x, 6=v6e, 5=v5e, ...)."""
    try:
        kind = jax.devices()[0].device_kind.lower()
    except Exception:
        return 6
    for g in (7, 6, 5, 4, 3):
        if ("v%d" % g) in kind or ("tpu%d" % g) in kind:
            return g
    return 6


def _pick_fold(K, Cg, depth):
    """Largest divisor p of K with p*Cg <= MXU contraction depth (no overshoot)."""
    best = 1
    for d in range(1, K + 1):
        if K % d == 0 and d * Cg <= depth:
            best = d
    return best


_INV_SQRT2 = 0.7071067811865476


def _erf_approx(x):
    # Abramowitz & Stegun 7.1.26, |err| <= 1.5e-7.  Uses only mul/add/div/exp
    # so it lowers cleanly in Mosaic (no dependence on an erf primitive).
    a1, a2, a3, a4, a5 = (0.254829592, -0.284496736, 1.421413741,
                          -1.453152027, 1.061405429)
    sign = jnp.where(x < 0.0, -1.0, 1.0)
    ax = jnp.abs(x)
    t = 1.0 / (1.0 + 0.3275911 * ax)
    poly = ((((a5 * t + a4) * t + a3) * t + a2) * t + a1) * t
    return sign * (1.0 - poly * jnp.exp(-ax * ax))


def _gelu_exact(x):
    # HF ACT2FN["gelu"] == exact (erf-based) GELU, evaluated in f32.
    return 0.5 * x * (1.0 + _erf_approx(x * _INV_SQRT2))


def _pos_conv_kernel(x_main_ref, x_halo_ref, w_ref, b_ref, o_ref, slab_ref, *,
                     G, Cg, p, M, K, T_TILE, W_slab):
    """One (batch, time-tile) grid step, channels-first layout.

    x_main_ref : (1, H, T_TILE)       current time tile of padded input (bf16)
    x_halo_ref : (1, H, T_HALO)       head of the next tile (halo)
    w_ref      : (G, M, Cg, p*Cg)     folded-tap weights, grid-invariant
    b_ref      : (H, 1)               conv bias (f32)
    o_ref      : (1, H, T_TILE)       gelu(conv(x)) for this tile
    slab_ref   : (p*Cg, W_slab)       per-group im2col^T scratch
    """
    tail0 = K - p                      # halo columns needed by slab row-block 0

    for g in range(G):                 # static: small group count
        c0 = g * Cg

        # ---- build im2col^T slab directly from main + halo refs -------------
        #   slab[j*Cg + ci, t] = x_pad[c0 + ci, tile_start + t + j]
        for j in range(p):             # static: p is small
            main_part = x_main_ref[0, c0:c0 + Cg, j:T_TILE]       # (Cg, T_TILE-j)
            tail = tail0 + j
            if tail > 0:
                row = jnp.concatenate(
                    [main_part, x_halo_ref[0, c0:c0 + Cg, 0:tail]], axis=1)
            else:
                row = main_part
            slab_ref[j * Cg:(j + 1) * Cg, :] = row

        # ---- fold-step contraction; accumulator is a loop-carried f32 value -
        if M <= 32:
            # fully static starts (lane offsets known at compile time)
            acc = jnp.zeros((Cg, T_TILE), jnp.float32)
            for m in range(M):
                rhs = slab_ref[:, m * p:m * p + T_TILE]           # (p*Cg, T_TILE)
                acc = acc + jnp.dot(w_ref[g, m], rhs,
                                    preferred_element_type=jnp.float32)
        else:
            def body(m, acc):
                start = pl.multiple_of(m * p, p)
                rhs = slab_ref[:, pl.ds(start, T_TILE)]
                return acc + jnp.dot(w_ref[g, m], rhs,
                                     preferred_element_type=jnp.float32)
            acc = lax.fori_loop(0, M, body,
                                jnp.zeros((Cg, T_TILE), jnp.float32), unroll=4)

        # bias + exact GELU in f32; (Cg, T_TILE) strip is full lane width and
        # its sublane offset g*Cg is aligned -> lane-dense store.
        y = acc + b_ref[c0:c0 + Cg, :]
        o_ref[0, c0:c0 + Cg, :] = _gelu_exact(y).astype(o_ref.dtype)


def data2vec_audio_pos_conv_embedding(x, weight, bias, *, kernel_size, groups,
                                      t_tile=None,
                                      compute_dtype=jnp.bfloat16):
    """x: (B, T, H); weight: (H, H//groups, K) [torch Conv1d layout]; bias: (H,).

    Returns (B, T, H) = gelu(PadLayer(Conv1d(x^T))^T), matching the PyTorch
    module.  `weight` must already have any weight_norm parametrization folded
    in (it is the effective Conv1d weight).
    """
    B, T, H = x.shape
    K, G = kernel_size, groups
    assert H % G == 0, "hidden_size must be divisible by the group count"
    Cg = H // G
    assert weight.shape == (H, Cg, K), (weight.shape, (H, Cg, K))
    P = K // 2
    # Conv1d(padding=K//2) keeps length T for odd K, gives T+1 for even K and
    # the PadLayer drops the last step -> output time length is always T.
    T_out = T

    gen = _tpu_generation()
    mxu_depth = 256 if gen >= 6 else 128
    if t_tile is None:
        # bigger tiles amortize the halo re-read and per-grid-step overhead;
        # v5e/v6e have 128 MiB VMEM, v7x only 64 MiB.
        t_tile = 1024 if gen <= 5 else 512

    # ---- tap folding: p*Cg fills, but never exceeds, the MXU contraction ----
    p = _pick_fold(K, Cg, mxu_depth)
    M = K // p

    # ---- tile geometry (time lives on lanes: everything multiple of 128) ----
    T_HALO = _round_up(max(K - 1, 1), 128)
    T_TILE = _round_up(min(t_tile, T_out), T_HALO)
    num_t = pl.cdiv(T_out, T_TILE)
    if gen >= 7:
        # v7x: make sure both TensorCores get grid work when B == 1.
        while B * num_t < 2 and T_TILE >= 2 * T_HALO:
            T_TILE -= T_HALO
            num_t = pl.cdiv(T_out, T_TILE)
    R = T_TILE // T_HALO                       # halo blocks per main tile
    T_pad_out = num_t * T_TILE                 # kernel-side (padded) output len
    L = T_pad_out + T_HALO                     # padded input time length
    W_slab = T_TILE + (K - p)                  # im2col slab width

    # ---- host-side prep ------------------------------------------------------
    # (B,T,H) -> channels-first (B,H,L) in compute dtype, with the conv's left
    # zero pad of K//2 and a zero tail so every (main, halo) block is fully in
    # bounds (no reliance on OOB masking).
    # TODO(synk): fold this transpose/cast/pad into the kernel (index math +
    # pl.when edge zero-fill) to save one HBM pass over the activations.
    x_cf = jnp.transpose(x, (0, 2, 1)).astype(compute_dtype)
    x_pad = jnp.pad(x_cf, ((0, 0), (0, 0), (P, L - P - T)))

    # torch Conv1d weight (H, Cg, K): out channel o = g*Cg + co reads input
    # channels [g*Cg, (g+1)*Cg).  Fold taps k = m*p + j into the contraction:
    #   w_fold[g, m, co, j*Cg + ci] = weight[g*Cg + co, ci, m*p + j]
    w = weight.reshape(G, Cg, Cg, K)            # (g, co, ci, k)
    w = w.reshape(G, Cg, Cg, M, p)              # (g, co, ci, m, j)
    w = jnp.transpose(w, (0, 3, 1, 4, 2))       # (g, m, co, j, ci)
    w_fold = w.reshape(G, M, Cg, p * Cg).astype(compute_dtype)
    b2 = bias.reshape(H, 1).astype(jnp.float32)

    out_dtype = x.dtype
    kernel = functools.partial(_pos_conv_kernel, G=G, Cg=Cg, p=p, M=M, K=K,
                               T_TILE=T_TILE, W_slab=W_slab)

    # ---- VMEM budget (weights conservatively counted double-buffered) -------
    itemsize = jnp.dtype(compute_dtype).itemsize
    w_bytes = G * M * _round_up(Cg, 16) * _round_up(p * Cg, 128) * itemsize
    io_bytes = (_round_up(H, 16) * (T_TILE + T_HALO) * itemsize           # main+halo
                + _round_up(H, 8) * T_TILE * jnp.dtype(out_dtype).itemsize  # output
                + _round_up(H, 8) * 128 * 4)                              # bias
    slab_bytes = _round_up(p * Cg, 16) * _round_up(W_slab, 128) * itemsize
    vmem_need = 2 * (w_bytes + io_bytes) + slab_bytes
    vmem_cap = (56 << 20) if gen >= 7 else (100 << 20)
    vmem_limit = int(min(vmem_cap, max(32 << 20, 2 * vmem_need)))

    y_cf = pl.pallas_call(
        kernel,
        out_shape=jax.ShapeDtypeStruct((B, H, T_pad_out), out_dtype),
        grid=(B, num_t),
        in_specs=[
            # current time tile (padded channels-first input)
            pl.BlockSpec((1, H, T_TILE), lambda b, t: (b, 0, t)),
            # halo: head of the next tile (same array, small block)
            pl.BlockSpec((1, H, T_HALO), lambda b, t: (b, 0, (t + 1) * R)),
            # folded weights: grid-invariant block -> fetched once, stays resident
            pl.BlockSpec((G, M, Cg, p * Cg), lambda b, t: (0, 0, 0, 0)),
            pl.BlockSpec((H, 1), lambda b, t: (0, 0)),
        ],
        out_specs=pl.BlockSpec((1, H, T_TILE), lambda b, t: (b, 0, t)),
        scratch_shapes=[
            pltpu.VMEM((p * Cg, W_slab), compute_dtype),   # im2col^T slab
        ],
        compiler_params=pltpu.CompilerParams(
            dimension_semantics=("parallel", "parallel"),
            vmem_limit_bytes=vmem_limit),
    )(x_pad, x_pad, w_fold, b2)

    # back to (B, T, H) like the module's final transpose (fuses with the slice)
    return jnp.transpose(y_cf[:, :, :T_out], (0, 2, 1))


def _reference(x, weight, bias, *, kernel_size, groups):
    """Pure-JAX f32 reference mirroring the PyTorch forward (verification)."""
    K = kernel_size
    pad = K // 2
    x_ncw = jnp.transpose(x, (0, 2, 1))                       # (B, H, T)
    y = lax.conv_general_dilated(
        x_ncw, weight,
        window_strides=(1,),
        padding=[(pad, pad)],
        dimension_numbers=("NCH", "OIH", "NCH"),
        feature_group_count=groups,
        precision=lax.Precision.HIGHEST,
    ) + bias[None, :, None]
    if K % 2 == 0:
        y = y[:, :, :-1]                                       # PadLayer
    y = jnp.transpose(y, (0, 2, 1))                            # (B, T, H)
    return jax.nn.gelu(y, approximate=False)


if __name__ == "__main__":
    def run_case(name, B, T, H, K, G):
        Cg = H // G
        key = jax.random.PRNGKey(0)
        kx, kw, kb = jax.random.split(key, 3)
        x = jax.random.normal(kx, (B, T, H), dtype=jnp.float32)
        weight = jax.random.normal(kw, (H, Cg, K), dtype=jnp.float32) * 0.05
        bias = jax.random.normal(kb, (H,), dtype=jnp.float32) * 0.05

        out = data2vec_audio_pos_conv_embedding(
            x, weight, bias, kernel_size=K, groups=G)
        out = jax.block_until_ready(out)

        ref = _reference(x, weight, bias, kernel_size=K, groups=G)
        assert out.shape == ref.shape, (name, out.shape, ref.shape)
        # bf16 inputs/weights with f32 accumulation -> relaxed tolerance.
        err = float(jnp.max(jnp.abs(out - ref)))
        assert jnp.allclose(out, ref, atol=5e-2, rtol=5e-2), (name, err)

    # odd K (no drop-last), single time tile, single fold step (M == 1)
    run_case("odd_k", B=2, T=16, H=32, K=5, G=2)
    # even K (drop-last), multi fold-step static path, partial output tail
    run_case("even_k", B=1, T=40, H=64, K=16, G=2)

    print("KERNEL_OK")
</pallas_src>

<mosaic_0001>
module attributes {stable_mosaic.version = 11 : i64} {
  func.func @_pos_conv_kernel(%arg0: i32, %arg1: i32, %arg2: memref<1x32x128xbf16, #tpu.memory_space<vmem>>, %arg3: memref<1x32x128xbf16, #tpu.memory_space<vmem>>, %arg4: memref<2x1x16x80xbf16, #tpu.memory_space<vmem>>, %arg5: memref<32x1xf32, #tpu.memory_space<vmem>>, %arg6: memref<1x32x128xf32, #tpu.memory_space<vmem>>, %arg7: memref<80x128xbf16, #tpu.memory_space<vmem>>) attributes {dimension_semantics = [#tpu.dimension_semantics<parallel>, #tpu.dimension_semantics<parallel>], iteration_bounds = array<i64: 2, 1>, scalar_prefetch = 0 : i64, scratch_operands = 1 : i64, tpu.core_type = #tpu.core_type<tc>, window_params = [{transform_indices = @transform_0, window_bounds = array<i64: 1, 32, 128>}, {transform_indices = @transform_1, window_bounds = array<i64: 1, 32, 128>}, {pipeline_mode = #tpu.pipeline_mode<synchronous>, transform_indices = @transform_2, window_bounds = array<i64: 2, 1, 16, 80>}, {pipeline_mode = #tpu.pipeline_mode<synchronous>, transform_indices = @transform_3, window_bounds = array<i64: 32, 1>}, {transform_indices = @transform_4, window_bounds = array<i64: 1, 32, 128>}]} {
    %c0 = arith.constant 0 : index
    %c0_0 = arith.constant 0 : index
    %c0_1 = arith.constant 0 : index
    %0 = vector.load %arg2[%c0, %c0_0, %c0_1] : memref<1x32x128xbf16, #tpu.memory_space<vmem>>, vector<1x16x128xbf16>
    %1 = vector.shape_cast %0 : vector<1x16x128xbf16> to vector<16x128xbf16>
    %c0_2 = arith.constant 0 : index
    %c0_3 = arith.constant 0 : index
    %2 = vector.load %arg7[%c0_2, %c0_3] : memref<80x128xbf16, #tpu.memory_space<vmem>>, vector<16x128xbf16>
    tpu.vector_store %arg7[%c0_2, %c0_3], %1 {strides = array<i32>} : memref<80x128xbf16, #tpu.memory_space<vmem>>, vector<16x128xbf16>,
    %c0_4 = arith.constant 0 : index
    %c0_5 = arith.constant 0 : index
    %c1 = arith.constant 1 : index
    %3 = vector.load %arg2[%c0_4, %c0_5, %c1] : memref<1x32x128xbf16, #tpu.memory_space<vmem>>, vector<1x16x127xbf16>
    %4 = vector.shape_cast %3 : vector<1x16x127xbf16> to vector<16x127xbf16>
    %c0_6 = arith.constant 0 : index
    %c0_7 = arith.constant 0 : index
    %c0_8 = arith.constant 0 : index
    %5 = vector.load %arg3[%c0_6, %c0_7, %c0_8] : memref<1x32x128xbf16, #tpu.memory_space<vmem>>, vector<1x16x1xbf16>
    %6 = vector.shape_cast %5 : vector<1x16x1xbf16> to vector<16x1xbf16>
    %7 = tpu.concatenate %4, %6 in 1 : vector<16x127xbf16>, vector<16x1xbf16> -> vector<16x128xbf16>
    %c16 = arith.constant 16 : index
    %c0_9 = arith.constant 0 : index
    %8 = vector.load %arg7[%c16, %c0_9] : memref<80x128xbf16, #tpu.memory_space<vmem>>, vector<16x128xbf16>
    tpu.vector_store %arg7[%c16, %c0_9], %7 {strides = array<i32>} : memref<80x128xbf16, #tpu.memory_space<vmem>>, vector<16x128xbf16>,
    %c0_10 = arith.constant 0 : index
    %c0_11 = arith.constant 0 : index
    %c2 = arith.constant 2 : index
    %9 = vector.load %arg2[%c0_10, %c0_11, %c2] : memref<1x32x128xbf16, #tpu.memory_space<vmem>>, vector<1x16x126xbf16>
    %10 = vector.shape_cast %9 : vector<1x16x126xbf16> to vector<16x126xbf16>
    %c0_12 = arith.constant 0 : index
    %c0_13 = arith.constant 0 : index
    %c0_14 = arith.constant 0 : index
    %11 = vector.load %arg3[%c0_12, %c0_13, %c0_14] : memref<1x32x128xbf16, #tpu.memory_space<vmem>>, vector<1x16x2xbf16>
    %12 = vector.shape_cast %11 : vector<1x16x2xbf16> to vector<16x2xbf16>
    %13 = tpu.concatenate %10, %12 in 1 : vector<16x126xbf16>, vector<16x2xbf16> -> vector<16x128xbf16>
    %c32 = arith.constant 32 : index
    %c0_15 = arith.constant 0 : index
    %14 = vector.load %arg7[%c32, %c0_15] : memref<80x128xbf16, #tpu.memory_space<vmem>>, vector<16x128xbf16>
    tpu.vector_store %arg7[%c32, %c0_15], %13 {strides = array<i32>} : memref<80x128xbf16, #tpu.memory_space<vmem>>, vector<16x128xbf16>,
    %c0_16 = arith.constant 0 : index
    %c0_17 = arith.constant 0 : index
    %c3 = arith.constant 3 : index
    %15 = vector.load %arg2[%c0_16, %c0_17, %c3] : memref<1x32x128xbf16, #tpu.memory_space<vmem>>, vector<1x16x125xbf16>
    %16 = vector.shape_cast %15 : vector<1x16x125xbf16> to vector<16x125xbf16>
    %c0_18 = arith.constant 0 : index
    %c0_19 = arith.constant 0 : index
    %c0_20 = arith.constant 0 : index
    %17 = vector.load %arg3[%c0_18, %c0_19, %c0_20] : memref<1x32x128xbf16, #tpu.memory_space<vmem>>, vector<1x16x3xbf16>
    %18 = vector.shape_cast %17 : vector<1x16x3xbf16> to vector<16x3xbf16>
    %19 = tpu.concatenate %16, %18 in 1 : vector<16x125xbf16>, vector<16x3xbf16> -> vector<16x128xbf16>
    %c48 = arith.constant 48 : index
    %c0_21 = arith.constant 0 : index
    %20 = vector.load %arg7[%c48, %c0_21] : memref<80x128xbf16, #tpu.memory_space<vmem>>, vector<16x128xbf16>
    tpu.vector_store %arg7[%c48, %c0_21], %19 {strides = array<i32>} : memref<80x128xbf16, #tpu.memory_space<vmem>>, vector<16x128xbf16>,
    %c0_22 = arith.constant 0 : index
    %c0_23 = arith.constant 0 : index
    %c4 = arith.constant 4 : index
    %21 = vector.load %arg2[%c0_22, %c0_23, %c4] : memref<1x32x128xbf16, #tpu.memory_space<vmem>>, vector<1x16x124xbf16>
    %22 = vector.shape_cast %21 : vector<1x16x124xbf16> to vector<16x124xbf16>
    %c0_24 = arith.constant 0 : index
    %c0_25 = arith.constant 0 : index
    %c0_26 = arith.constant 0 : index
    %23 = vector.load %arg3[%c0_24, %c0_25, %c0_26] : memref<1x32x128xbf16, #tpu.memory_space<vmem>>, vector<1x16x4xbf16>
    %24 = vector.shape_cast %23 : vector<1x16x4xbf16> to vector<16x4xbf16>
    %25 = tpu.concatenate %22, %24 in 1 : vector<16x124xbf16>, vector<16x4xbf16> -> vector<16x128xbf16>
    %c64 = arith.constant 64 : index
    %c0_27 = arith.constant 0 : index
    %26 = vector.load %arg7[%c64, %c0_27] : memref<80x128xbf16, #tpu.memory_space<vmem>>, vector<16x128xbf16>
    tpu.vector_store %arg7[%c64, %c0_27], %25 {strides = array<i32>} : memref<80x128xbf16, #tpu.memory_space<vmem>>, vector<16x128xbf16>,
    %cst = arith.constant 0.000000e+00 : f32
    %27 = vector.broadcast %cst : f32 to vector<16x128xf32>
    %c0_28 = arith.constant 0 : index
    %c0_29 = arith.constant 0 : index
    %28 = vector.load %arg7[%c0_28, %c0_29] : memref<80x128xbf16, #tpu.memory_space<vmem>>, vector<80x128xbf16>
    %c0_30 = arith.constant 0 : index
    %c0_31 = arith.constant 0 : index
    %c0_32 = arith.constant 0 : index
    %c0_33 = arith.constant 0 : index
    %29 = vector.load %arg4[%c0_30, %c0_31, %c0_32, %c0_33] : memref<2x1x16x80xbf16, #tpu.memory_space<vmem>>, vector<1x1x16x80xbf16>
    %30 = vector.shape_cast %29 : vector<1x1x16x80xbf16> to vector<16x80xbf16>
    %cst_34 = arith.constant dense<0.000000e+00> : vector<16x128xf32>
    %31 = tpu.matmul %30, %28, %cst_34 {dimension_numbers = #tpu.dot_dimension_numbers<[1], [0], [0], [1], [0, 0, 1, 1], [], []>} : vector<16x80xbf16>, vector<80x128xbf16>, vector<16x128xf32> -> vector<16x128xf32>
    %32 = arith.addf %27, %31 : vector<16x128xf32>
    %c0_35 = arith.constant 0 : index
    %c0_36 = arith.constant 0 : index
    %33 = vector.load %arg5[%c0_35, %c0_36] : memref<32x1xf32, #tpu.memory_space<vmem>>, vector<16x1xf32>
    %34 = vector.broadcast %33 : vector<16x1xf32> to vector<16x128xf32>
    %35 = arith.addf %32, %34 : vector<16x128xf32>
    %cst_37 = arith.constant 5.000000e-01 : f32
    %36 = vector.broadcast %cst_37 : f32 to vector<16x128xf32>
    %37 = arith.mulf %36, %35 : vector<16x128xf32>
    %cst_38 = arith.constant 0.707106769 : f32
    %38 = vector.broadcast %cst_38 : f32 to vector<16x128xf32>
    %39 = arith.mulf %35, %38 : vector<16x128xf32>
    %cst_39 = arith.constant 0.000000e+00 : f32
    %40 = vector.broadcast %cst_39 : f32 to vector<16x128xf32>
    %41 = arith.cmpf olt, %39, %40 : vector<16x128xf32>
    %cst_40 = arith.constant -1.000000e+00 : f32
    %cst_41 = arith.constant 1.000000e+00 : f32
    %42 = vector.broadcast %cst_40 : f32 to vector<16x128xf32>
    %43 = vector.broadcast %cst_41 : f32 to vector<16x128xf32>
    %44 = arith.select %41, %42, %43 : vector<16x128xi1>, vector<16x128xf32>
    %45 = math.absf %39 : vector<16x128xf32>
    %cst_42 = arith.constant 0.327591091 : f32
    %46 = vector.broadcast %cst_42 : f32 to vector<16x128xf32>
    %47 = arith.mulf %46, %45 : vector<16x128xf32>
    %cst_43 = arith.constant 1.000000e+00 : f32
    %48 = vector.broadcast %cst_43 : f32 to vector<16x128xf32>
    %49 = arith.addf %48, %47 : vector<16x128xf32>
    %cst_44 = arith.constant 1.000000e+00 : f32
    %50 = vector.broadcast %cst_44 : f32 to vector<16x128xf32>
    %51 = arith.divf %50, %49 : vector<16x128xf32>
    %cst_45 = arith.constant 1.06140542 : f32
    %52 = vector.broadcast %cst_45 : f32 to vector<16x128xf32>
    %53 = arith.mulf %52, %51 : vector<16x128xf32>
    %cst_46 = arith.constant -1.45315206 : f32
    %54 = vector.broadcast %cst_46 : f32 to vector<16x128xf32>
    %55 = arith.addf %53, %54 : vector<16x128xf32>
    %56 = arith.mulf %55, %51 : vector<16x128xf32>
    %cst_47 = arith.constant 1.42141378 : f32
    %57 = vector.broadcast %cst_47 : f32 to vector<16x128xf32>
    %58 = arith.addf %56, %57 : vector<16x128xf32>
    %59 = arith.mulf %58, %51 : vector<16x128xf32>
    %cst_48 = arith.constant -0.284496725 : f32
    %60 = vector.broadcast %cst_48 : f32 to vector<16x128xf32>
    %61 = arith.addf %59, %60 : vector<16x128xf32>
    %62 = arith.mulf %61, %51 : vector<16x128xf32>
    %cst_49 = arith.constant 0.254829586 : f32
    %63 = vector.broadcast %cst_49 : f32 to vector<16x128xf32>
    %64 = arith.addf %62, %63 : vector<16x128xf32>
    %65 = arith.mulf %64, %51 : vector<16x128xf32>
    %cst_50 = arith.constant 0.000000e+00 : f32
    %66 = vector.broadcast %cst_50 : f32 to vector<16x128xf32>
    %67 = arith.subf %66, %45 : vector<16x128xf32>
    %68 = arith.mulf %67, %45 : vector<16x128xf32>
    %69 = math.exp %68 : vector<16x128xf32>
    %70 = arith.mulf %65, %69 : vector<16x128xf32>
    %cst_51 = arith.constant 1.000000e+00 : f32
    %71 = vector.broadcast %cst_51 : f32 to vector<16x128xf32>
    %72 = arith.subf %71, %70 : vector<16x128xf32>
    %73 = arith.mulf %44, %72 : vector<16x128xf32>
    %cst_52 = arith.constant 1.000000e+00 : f32
    %74 = vector.broadcast %cst_52 : f32 to vector<16x128xf32>
    %75 = arith.addf %74, %73 : vector<16x128xf32>
    %76 = arith.mulf %37, %75 : vector<16x128xf32>
    %c0_53 = arith.constant 0 : index
    %c0_54 = arith.constant 0 : index
    %c0_55 = arith.constant 0 : index
    %77 = vector.load %arg6[%c0_53, %c0_54, %c0_55] : memref<1x32x128xf32, #tpu.memory_space<vmem>>, vector<1x16x128xf32>
    %78 = vector.shape_cast %77 : vector<1x16x128xf32> to vector<16x128xf32>
    %79 = vector.shape_cast %76 : vector<16x128xf32> to vector<1x16x128xf32>
    tpu.vector_store %arg6[%c0_53, %c0_54, %c0_55], %79 {strides = array<i32>} : memref<1x32x128xf32, #tpu.memory_space<vmem>>, vector<1x16x128xf32>,
    %c0_56 = arith.constant 0 : index
    %c16_57 = arith.constant 16 : index
    %c0_58 = arith.constant 0 : index
    %80 = vector.load %arg2[%c0_56, %c16_57, %c0_58] : memref<1x32x128xbf16, #tpu.memory_space<vmem>>, vector<1x16x128xbf16>
    %81 = vector.shape_cast %80 : vector<1x16x128xbf16> to vector<16x128xbf16>
    %c0_59 = arith.constant 0 : index
    %c0_60 = arith.constant 0 : index
    %82 = vector.load %arg7[%c0_59, %c0_60] : memref<80x128xbf16, #tpu.memory_space<vmem>>, vector<16x128xbf16>
    tpu.vector_store %arg7[%c0_59, %c0_60], %81 {strides = array<i32>} : memref<80x128xbf16, #tpu.memory_space<vmem>>, vector<16x128xbf16>,
    %c0_61 = arith.constant 0 : index
    %c16_62 = arith.constant 16 : index
    %c1_63 = arith.constant 1 : index
    %83 = vector.load %arg2[%c0_61, %c16_62, %c1_63] : memref<1x32x128xbf16, #tpu.memory_space<vmem>>, vector<1x16x127xbf16>
    %84 = vector.shape_cast %83 : vector<1x16x127xbf16> to vector<16x127xbf16>
    %c0_64 = arith.constant 0 : index
    %c16_65 = arith.constant 16 : index
    %c0_66 = arith.constant 0 : index
    %85 = vector.load %arg3[%c0_64, %c16_65, %c0_66] : memref<1x32x128xbf16, #tpu.memory_space<vmem>>, vector<1x16x1xbf16>
    %86 = vector.shape_cast %85 : vector<1x16x1xbf16> to vector<16x1xbf16>
    %87 = tpu.concatenate %84, %86 in 1 : vector<16x127xbf16>, vector<16x1xbf16> -> vector<16x128xbf16>
    %c16_67 = arith.constant 16 : index
    %c0_68 = arith.constant 0 : index
    %88 = vector.load %arg7[%c16_67, %c0_68] : memref<80x128xbf16, #tpu.memory_space<vmem>>, vector<16x128xbf16>
    tpu.vector_store %arg7[%c16_67, %c0_68], %87 {strides = array<i32>} : memref<80x128xbf16, #tpu.memory_space<vmem>>, vector<16x128xbf16>,
    %c0_69 = arith.constant 0 : index
    %c16_70 = arith.constant 16 : index
    %c2_71 = arith.constant 2 : index
    %89 = vector.load %arg2[%c0_69, %c16_70, %c2_71] : memref<1x32x128xbf16, #tpu.memory_space<vmem>>, vector<1x16x126xbf16>
    %90 = vector.shape_cast %89 : vector<1x16x126xbf16> to vector<16x126xbf16>
    %c0_72 = arith.constant 0 : index
    %c16_73 = arith.constant 16 : index
    %c0_74 = arith.constant 0 : index
    %91 = vector.load %arg3[%c0_72, %c16_73, %c0_74] : memref<1x32x128xbf16, #tpu.memory_space<vmem>>, vector<1x16x2xbf16>
    %92 = vector.shape_cast %91 : vector<1x16x2xbf16> to vector<16x2xbf16>
    %93 = tpu.concatenate %90, %92 in 1 : vector<16x126xbf16>, vector<16x2xbf16> -> vector<16x128xbf16>
    %c32_75 = arith.constant 32 : index
    %c0_76 = arith.constant 0 : index
    %94 = vector.load %arg7[%c32_75, %c0_76] : memref<80x128xbf16, #tpu.memory_space<vmem>>, vector<16x128xbf16>
    tpu.vector_store %arg7[%c32_75, %c0_76], %93 {strides = array<i32>} : memref<80x128xbf16, #tpu.memory_space<vmem>>, vector<16x128xbf16>,
    %c0_77 = arith.constant 0 : index
    %c16_78 = arith.constant 16 : index
    %c3_79 = arith.constant 3 : index
    %95 = vector.load %arg2[%c0_77, %c16_78, %c3_79] : memref<1x32x128xbf16, #tpu.memory_space<vmem>>, vector<1x16x125xbf16>
    %96 = vector.shape_cast %95 : vector<1x16x125xbf16> to vector<16x125xbf16>
    %c0_80 = arith.constant 0 : index
    %c16_81 = arith.constant 16 : index
    %c0_82 = arith.constant 0 : index
    %97 = vector.load %arg3[%c0_80, %c16_81, %c0_82] : memref<1x32x128xbf16, #tpu.memory_space<vmem>>, vector<1x16x3xbf16>
    %98 = vector.shape_cast %97 : vector<1x16x3xbf16> to vector<16x3xbf16>
    %99 = tpu.concatenate %96, %98 in 1 : vector<16x125xbf16>, vector<16x3xbf16> -> vector<16x128xbf16>
    %c48_83 = arith.constant 48 : index
    %c0_84 = arith.constant 0 : index
    %100 = vector.load %arg7[%c48_83, %c0_84] : memref<80x128xbf16, #tpu.memory_space<vmem>>, vector<16x128xbf16>
    tpu.vector_store %arg7[%c48_83, %c0_84], %99 {strides = array<i32>} : memref<80x128xbf16, #tpu.memory_space<vmem>>, vector<16x128xbf16>,
    %c0_85 = arith.constant 0 : index
    %c16_86 = arith.constant 16 : index
    %c4_87 = arith.constant 4 : index
    %101 = vector.load %arg2[%c0_85, %c16_86, %c4_87] : memref<1x32x128xbf16, #tpu.memory_space<vmem>>, vector<1x16x124xbf16>
    %102 = vector.shape_cast %101 : vector<1x16x124xbf16> to vector<16x124xbf16>
    %c0_88 = arith.constant 0 : index
    %c16_89 = arith.constant 16 : index
    %c0_90 = arith.constant 0 : index
    %103 = vector.load %arg3[%c0_88, %c16_89, %c0_90] : memref<1x32x128xbf16, #tpu.memory_space<vmem>>, vector<1x16x4xbf16>
    %104 = vector.shape_cast %103 : vector<1x16x4xbf16> to vector<16x4xbf16>
    %105 = tpu.concatenate %102, %104 in 1 : vector<16x124xbf16>, vector<16x4xbf16> -> vector<16x128xbf16>
    %c64_91 = arith.constant 64 : index
    %c0_92 = arith.constant 0 : index
    %106 = vector.load %arg7[%c64_91, %c0_92] : memref<80x128xbf16, #tpu.memory_space<vmem>>, vector<16x128xbf16>
    tpu.vector_store %arg7[%c64_91, %c0_92], %105 {strides = array<i32>} : memref<80x128xbf16, #tpu.memory_space<vmem>>, vector<16x128xbf16>,
    %cst_93 = arith.constant 0.000000e+00 : f32
    %107 = vector.broadcast %cst_93 : f32 to vector<16x128xf32>
    %c0_94 = arith.constant 0 : index
    %c0_95 = arith.constant 0 : index
    %108 = vector.load %arg7[%c0_94, %c0_95] : memref<80x128xbf16, #tpu.memory_space<vmem>>, vector<80x128xbf16>
    %c1_96 = arith.constant 1 : index
    %c0_97 = arith.constant 0 : index
    %c0_98 = arith.constant 0 : index
    %c0_99 = arith.constant 0 : index
    %109 = vector.load %arg4[%c1_96, %c0_97, %c0_98, %c0_99] : memref<2x1x16x80xbf16, #tpu.memory_space<vmem>>, vector<1x1x16x80xbf16>
    %110 = vector.shape_cast %109 : vector<1x1x16x80xbf16> to vector<16x80xbf16>
    %cst_100 = arith.constant dense<0.000000e+00> : vector<16x128xf32>
    %111 = tpu.matmul %110, %108, %cst_100 {dimension_numbers = #tpu.dot_dimension_numbers<[1], [0], [0], [1], [0, 0, 1, 1], [], []>} : vector<16x80xbf16>, vector<80x128xbf16>, vector<16x128xf32> -> vector<16x128xf32>
    %112 = arith.addf %107, %111 : vector<16x128xf32>
    %c16_101 = arith.constant 16 : index
    %c0_102 = arith.constant 0 : index
    %113 = vector.load %arg5[%c16_101, %c0_102] : memref<32x1xf32, #tpu.memory_space<vmem>>, vector<16x1xf32>
    %114 = vector.broadcast %113 : vector<16x1xf32> to vector<16x128xf32>
    %115 = arith.addf %112, %114 : vector<16x128xf32>
    %cst_103 = arith.constant 5.000000e-01 : f32
    %116 = vector.broadcast %cst_103 : f32 to vector<16x128xf32>
    %117 = arith.mulf %116, %115 : vector<16x128xf32>
    %cst_104 = arith.constant 0.707106769 : f32
    %118 = vector.broadcast %cst_104 : f32 to vector<16x128xf32>
    %119 = arith.mulf %115, %118 : vector<16x128xf32>
    %cst_105 = arith.constant 0.000000e+00 : f32
    %120 = vector.broadcast %cst_105 : f32 to vector<16x128xf32>
    %121 = arith.cmpf olt, %119, %120 : vector<16x128xf32>
    %cst_106 = arith.constant -1.000000e+00 : f32
    %cst_107 = arith.constant 1.000000e+00 : f32
    %122 = vector.broadcast %cst_106 : f32 to vector<16x128xf32>
    %123 = vector.broadcast %cst_107 : f32 to vector<16x128xf32>
    %124 = arith.select %121, %122, %123 : vector<16x128xi1>, vector<16x128xf32>
    %125 = math.absf %119 : vector<16x128xf32>
    %cst_108 = arith.constant 0.327591091 : f32
    %126 = vector.broadcast %cst_108 : f32 to vector<16x128xf32>
    %127 = arith.mulf %126, %125 : vector<16x128xf32>
    %cst_109 = arith.constant 1.000000e+00 : f32
    %128 = vector.broadcast %cst_109 : f32 to vector<16x128xf32>
    %129 = arith.addf %128, %127 : vector<16x128xf32>
    %cst_110 = arith.constant 1.000000e+00 : f32
    %130 = vector.broadcast %cst_110 : f32 to vector<16x128xf32>
    %131 = arith.divf %130, %129 : vector<16x128xf32>
    %cst_111 = arith.constant 1.06140542 : f32
    %132 = vector.broadcast %cst_111 : f32 to vector<16x128xf32>
    %133 = arith.mulf %132, %131 : vector<16x128xf32>
    %cst_112 = arith.constant -1.45315206 : f32
    %134 = vector.broadcast %cst_112 : f32 to vector<16x128xf32>
    %135 = arith.addf %133, %134 : vector<16x128xf32>
    %136 = arith.mulf %135, %131 : vector<16x128xf32>
    %cst_113 = arith.constant 1.42141378 : f32
    %137 = vector.broadcast %cst_113 : f32 to vector<16x128xf32>
    %138 = arith.addf %136, %137 : vector<16x128xf32>
    %139 = arith.mulf %138, %131 : vector<16x128xf32>
    %cst_114 = arith.constant -0.284496725 : f32
    %140 = vector.broadcast %cst_114 : f32 to vector<16x128xf32>
    %141 = arith.addf %139, %140 : vector<16x128xf32>
    %142 = arith.mulf %141, %131 : vector<16x128xf32>
    %cst_115 = arith.constant 0.254829586 : f32
    %143 = vector.broadcast %cst_115 : f32 to vector<16x128xf32>
    %144 = arith.addf %142, %143 : vector<16x128xf32>
    %145 = arith.mulf %144, %131 : vector<16x128xf32>
    %cst_116 = arith.constant 0.000000e+00 : f32
    %146 = vector.broadcast %cst_116 : f32 to vector<16x128xf32>
    %147 = arith.subf %146, %125 : vector<16x128xf32>
    %148 = arith.mulf %147, %125 : vector<16x128xf32>
    %149 = math.exp %148 : vector<16x128xf32>
    %150 = arith.mulf %145, %149 : vector<16x128xf32>
    %cst_117 = arith.constant 1.000000e+00 : f32
    %151 = vector.broadcast %cst_117 : f32 to vector<16x128xf32>
    %152 = arith.subf %151, %150 : vector<16x128xf32>
    %153 = arith.mulf %124, %152 : vector<16x128xf32>
    %cst_118 = arith.constant 1.000000e+00 : f32
    %154 = vector.broadcast %cst_118 : f32 to vector<16x128xf32>
    %155 = arith.addf %154, %153 : vector<16x128xf32>
    %156 = arith.mulf %117, %155 : vector<16x128xf32>
    %c0_119 = arith.constant 0 : index
    %c16_120 = arith.constant 16 : index
    %c0_121 = arith.constant 0 : index
    %157 = vector.load %arg6[%c0_119, %c16_120, %c0_121] : memref<1x32x128xf32, #tpu.memory_space<vmem>>, vector<1x16x128xf32>
    %158 = vector.shape_cast %157 : vector<1x16x128xf32> to vector<16x128xf32>
    %159 = vector.shape_cast %156 : vector<16x128xf32> to vector<1x16x128xf32>
    tpu.vector_store %arg6[%c0_119, %c16_120, %c0_121], %159 {strides = array<i32>} : memref<1x32x128xf32, #tpu.memory_space<vmem>>, vector<1x16x128xf32>,
    return
  }
  func.func @transform_0(%arg0: i32, %arg1: i32) -> (i32, i32, i32) {
    %c0_i32 = arith.constant 0 : i32
    %c0_i32_0 = arith.constant 0 : i32
    return %arg0, %c0_i32, %arg1 : i32, i32, i32
  }
  func.func @transform_1(%arg0: i32, %arg1: i32) -> (i32, i32, i32) {
    %c1_i32 = arith.constant 1 : i32
    %0 = arith.addi %arg1, %c1_i32 : i32
    %c1_i32_0 = arith.constant 1 : i32
    %1 = arith.muli %0, %c1_i32_0 : i32
    %c0_i32 = arith.constant 0 : i32
    %c0_i32_1 = arith.constant 0 : i32
    return %arg0, %c0_i32, %1 : i32, i32, i32
  }
  func.func @transform_2(%arg0: i32, %arg1: i32) -> (i32, i32, i32, i32) {
    %c0_i32 = arith.constant 0 : i32
    %c0_i32_0 = arith.constant 0 : i32
    %c0_i32_1 = arith.constant 0 : i32
    %c0_i32_2 = arith.constant 0 : i32
    %c0_i32_3 = arith.constant 0 : i32
    return %c0_i32, %c0_i32_0, %c0_i32_1, %c0_i32_2 : i32, i32, i32, i32
  }
  func.func @transform_3(%arg0: i32, %arg1: i32) -> (i32, i32) {
    %c0_i32 = arith.constant 0 : i32
    %c0_i32_0 = arith.constant 0 : i32
    %c0_i32_1 = arith.constant 0 : i32
    return %c0_i32, %c0_i32_0 : i32, i32
  }
  func.func @transform_4(%arg0: i32, %arg1: i32) -> (i32, i32, i32) {
    %c0_i32 = arith.constant 0 : i32
    %c0_i32_0 = arith.constant 0 : i32
    return %arg0, %c0_i32, %arg1 : i32, i32, i32
  }
}

</mosaic_0001>

<llo_original>
// kernel: tpu_custom_call.1
$region0: #{tpu_custom_call.1}
  #allocation0 [shape = 'u32[]', space=smem, size = 0x4, offset = 0x4, fixed_abs, tag = 'smem constant byte address 0x4 - core index']
  #allocation1 [shape = 'u32[144,128]{1,0:T(1,128)}', space=vmem, size = 0x12000, scoped, tag = 'internal scratch']
  #allocation2 [shape = 'bf16[80,128]{1,0:T(16,128)(2,1)}', space=vmem, size = 0x5000, scoped, tag = 'scratch operand']
  %s0 = inlined_call_operand.hbm [shape: bf16[2,32,256], index: 0, kind: input, shape index: {}]
  %s1 = inlined_call_operand.hbm [shape: bf16[2,32,256], index: 1, kind: input, shape index: {}]
  %s2 = inlined_call_operand.vmem [shape: bf16[2,1,16,80], index: 2, kind: input, shape index: {}]
  %s3 = inlined_call_operand.vmem [shape: f32[32,1], index: 3, kind: input, shape index: {}]
  %s4 = inlined_call_operand.hbm [shape: f32[2,32,128], index: 4, kind: output, shape index: {}]
  %s5 = sld [smem:[#allocation0]]
  $region57: #{tpu_custom_call.1} parent=0
    _
  %s7 = ssub.s32 1, %s5
  %s8 = scalar_select 0, %s7, %s5
  $region1: #{tpu_custom_call.1} parent=0
    #allocation3 [shape = 'u8[16384]{0}', space=vmem, size = 0x4000, scoped, tag = 'input window, operand 0']
    #allocation4 [shape = 's32[2]{0}', space=sflag, size = 0x8, scoped, tag = 'scoped memory for tpu_custom_call.1']
    #allocation5 [shape = 's32[2]{0}', space=sflag, size = 0x8, scoped, tag = 'scoped memory for tpu_custom_call.1']
    #allocation6 [shape = 'u8[16384]{0}', space=vmem, size = 0x4000, scoped, tag = 'input window, operand 1']
    #allocation7 [shape = 's32[2]{0}', space=sflag, size = 0x8, scoped, tag = 'scoped memory for tpu_custom_call.1']
    #allocation8 [shape = 'u8[32768]{0}', space=vmem, size = 0x8000, scoped, tag = 'output window, operand 0']
    %9 = vsyncpa [#allocation4], 0
    %s10 = scalar_lea.sflag [#allocation4], 1
    %11 = vsyncpa %s10, 0
    %12 = vsyncpa [#allocation7], 0
    %s13 = scalar_lea.sflag [#allocation7], 1
    %14 = vsyncpa %s13, 0
    %15 = vsyncpa [#allocation5], 0
    %s16 = scalar_lea.sflag [#allocation5], 1
    %17 = vsyncpa %s16, 0
    loop: start=0, step=1, limit=4
    $region2: #{tpu_custom_call.1} parent=1 // loop_pre_header
      _
    $region3: #{tpu_custom_call.1} parent=1 // loop_header
      %s19 = sphi 0, %s23
      %p20 = scmp.ge.s32.totalorder %s19, 4
      %s26 = sphi 0, %s38
      %s27 = sphi 0, %s34
      %s28 = sphi 0, %s26
      %s29 = sphi 0, %s27
      %s30 = sphi 0, %s28
      %s31 = sphi 0, %s29
      %s43 = sphi 0, %s45
      %s46 = sphi 0, %s43
      %s47 = sphi 0, %s46
      %s63 = sphi 0, %s47
      %s73 = sphi 0, %s75
      %s76 = sphi 0, %s73
      %s77 = sphi 0, %s76
      %s93 = sphi 0, %s77
      %s97 = sphi 0, %s97
      %s99 = sphi 0, %s97
      %s100 = sphi 0, %s99
      %s114 = sphi 0, %s100
      %s118 = sphi 0, %s118
      %s120 = sphi 0, %s118
      %s121 = sphi 0, %s120
      %s135 = sphi 0, %s121
      %s143 = sphi 0, %s145
      %s146 = sphi 0, %s143
      %s147 = sphi 0, %s146
      %s163 = sphi 0, %s147
    $region4: #{tpu_custom_call.1} parent=1 // loop_header_branch
      %22 = sbr.rel (%p20) target = $region8
    $region5: #{tpu_custom_call.1} parent=1 // loop_body
      %s24 = ssub.s32 %s19, 1
      %s25 = ssub.s32 %s19, 2
      %s32 = sadd.s32 1, %s27
      %p33 = scmp.ge.s32.totalorder %s32, 1
      %s34 = scalar_select %p33, 0, %s32
      %s35 = sadd.s32 1, %s26
      %s36 = scalar_select %p33, %s35, %s26
      %p37 = scmp.ge.s32.totalorder %s36, 2
      %s38 = scalar_select %p37, 0, %s36
      %s39 = ssub.s32 %s26, %s38
      %s40 = ssub.s32 %s27, %s34
      %s41 = sor.u32 %s39, %s40
      %p42 = scmp.eq.s32.totalorder %s41, 0
      %s44 = sadd.s32 %s43, 1
      %s45 = scalar_select %p42, %s43, %s44
      %p48 = pneg %p42
      %p49 = scmp.eq.s32.totalorder %s19, 1
      %p50 = por %p48, %p49
      %p51 = scmp.ne.s32.totalorder %s43, %s46
      %p52 = scmp.eq.s32.totalorder %s19, 0
      %p53 = por %p51, %p52
      %p54 = scmp.ne.s32.totalorder %s43, %s46
      %p55 = scmp.eq.s32.totalorder %s24, 1
      %p56 = por %p54, %p55
      %p57 = scmp.ne.s32.totalorder %s46, %s47
      %p58 = scmp.eq.s32.totalorder %s24, 0
      %p59 = por %p57, %p58
      %p60 = scmp.ne.s32.totalorder %s46, %s47
      %p61 = scmp.eq.s32.totalorder %s25, 1
      %p62 = por %p60, %p61
      %p64 = scmp.ne.s32.totalorder %s47, %s63
      %p65 = scmp.eq.s32.totalorder %s25, 0
      %p66 = por %p64, %p65
      %s67 = sadd.s32 %s27, 1
      %s68 = sadd.s32 %s34, 1
      %s69 = ssub.s32 %s26, %s38
      %s70 = ssub.s32 %s67, %s68
      %s71 = sor.u32 %s69, %s70
      %p72 = scmp.eq.s32.totalorder %s71, 0
      %s74 = sadd.s32 %s73, 1
      %s75 = scalar_select %p72, %s73, %s74
      %p78 = pneg %p72
      %p79 = scmp.eq.s32.totalorder %s19, 1
      %p80 = por %p78, %p79
      %p81 = scmp.ne.s32.totalorder %s73, %s76
      %p82 = scmp.eq.s32.totalorder %s19, 0
      %p83 = por %p81, %p82
      %p84 = scmp.ne.s32.totalorder %s73, %s76
      %p85 = scmp.eq.s32.totalorder %s24, 1
      %p86 = por %p84, %p85
      %p87 = scmp.ne.s32.totalorder %s76, %s77
      %p88 = scmp.eq.s32.totalorder %s24, 0
      %p89 = por %p87, %p88
      %p90 = scmp.ne.s32.totalorder %s76, %s77
      %p91 = scmp.eq.s32.totalorder %s25, 1
      %p92 = por %p90, %p91
      %p94 = scmp.ne.s32.totalorder %s77, %s93
      %p95 = scmp.eq.s32.totalorder %s25, 0
      %p96 = por %p94, %p95
      %s98 = sadd.s32 %s97, 1
      %p101 = scmp.eq.s32.totalorder %s19, 1
      %p102 = scmp.ne.s32.totalorder %s97, %s99
      %p103 = scmp.eq.s32.totalorder %s19, 0
      %p104 = por %p102, %p103
      %p105 = scmp.ne.s32.totalorder %s97, %s99
      %p106 = scmp.eq.s32.totalorder %s24, 1
      %p107 = por %p105, %p106
      %p108 = scmp.ne.s32.totalorder %s99, %s100
      %p109 = scmp.eq.s32.totalorder %s24, 0
      %p110 = por %p108, %p109
      %p111 = scmp.ne.s32.totalorder %s99, %s100
      %p112 = scmp.eq.s32.totalorder %s25, 1
      %p113 = por %p111, %p112
      %p115 = scmp.ne.s32.totalorder %s100, %s114
      %p116 = scmp.eq.s32.totalorder %s25, 0
      %p117 = por %p115, %p116
      %s119 = sadd.s32 %s118, 1
      %p122 = scmp.eq.s32.totalorder %s19, 1
      %p123 = scmp.ne.s32.totalorder %s118, %s120
      %p124 = scmp.eq.s32.totalorder %s19, 0
      %p125 = por %p123, %p124
      %p126 = scmp.ne.s32.totalorder %s118, %s120
      %p127 = scmp.eq.s32.totalorder %s24, 1
      %p128 = por %p126, %p127
      %p129 = scmp.ne.s32.totalorder %s120, %s121
      %p130 = scmp.eq.s32.totalorder %s24, 0
      %p131 = por %p129, %p130
      %p132 = scmp.ne.s32.totalorder %s120, %s121
      %p133 = scmp.eq.s32.totalorder %s25, 1
      %p134 = por %p132, %p133
      %p136 = scmp.ne.s32.totalorder %s121, %s135
      %p137 = scmp.eq.s32.totalorder %s25, 0
      %p138 = por %p136, %p137
      %s139 = ssub.s32 %s26, %s38
      %s140 = ssub.s32 %s27, %s34
      %s141 = sor.u32 %s139, %s140
      %p142 = scmp.eq.s32.totalorder %s141, 0
      %s144 = sadd.s32 %s143, 1
      %s145 = scalar_select %p142, %s143, %s144
      %p148 = pneg %p142
      %p149 = scmp.eq.s32.totalorder %s19, 1
      %p150 = por %p148, %p149
      %p151 = scmp.ne.s32.totalorder %s143, %s146
      %p152 = scmp.eq.s32.totalorder %s19, 0
      %p153 = por %p151, %p152
      %p154 = scmp.ne.s32.totalorder %s143, %s146
      %p155 = scmp.eq.s32.totalorder %s24, 1
      %p156 = por %p154, %p155
      %p157 = scmp.ne.s32.totalorder %s146, %s147
      %p158 = scmp.eq.s32.totalorder %s24, 0
      %p159 = por %p157, %p158
      %p160 = scmp.ne.s32.totalorder %s146, %s147
      %p161 = scmp.eq.s32.totalorder %s25, 1
      %p162 = por %p160, %p161
      %p164 = scmp.ne.s32.totalorder %s147, %s163
      %p165 = scmp.eq.s32.totalorder %s25, 0
      %p166 = por %p164, %p165
      %p167 = scmp.le.s32.totalorder 1, %s19
      %p168 = scmp.lt.s32.totalorder %s19, 3
      %p169 = pnand %p167, %p168
      %p170 = pneg %p169
      // Predicated region
      $region9: #{tpu_custom_call.1} parent=5 // pred_check
        _
      $region10: #{tpu_custom_call.1} parent=5 // pred_check_branch
        %172 = sbr.rel (%p169) target = $region12
      $region11: #{tpu_custom_call.1} parent=5 // pred_region
        %s173 = ssub.s32 %s19, 1
        // Predicated region
        $region13: #{tpu_custom_call.1} parent=11 // pred_check
          %p174 = pneg %p110
        $region14: #{tpu_custom_call.1} parent=11 // pred_check_branch
          %176 = sbr.rel (%p174) target = $region16
        $region15: #{tpu_custom_call.1} parent=11 // pred_region
          _
        $region16: #{tpu_custom_call.1} parent=11 // pred_fallthru
          _
        // Predicated region
        $region17: #{tpu_custom_call.1} parent=11 // pred_check
          %p177 = pneg %p131
        $region18: #{tpu_custom_call.1} parent=11 // pred_check_branch
          %179 = sbr.rel (%p177) target = $region20
        $region19: #{tpu_custom_call.1} parent=11 // pred_region
          _
        $region20: #{tpu_custom_call.1} parent=11 // pred_fallthru
          _
      $region12: #{tpu_custom_call.1} parent=5 // pred_fallthru
        _
      %p180 = scmp.lt.s32.totalorder %s19, 2
      // Predicated region
      $region21: #{tpu_custom_call.1} parent=5 // pred_check
        %p181 = pneg %p180
      $region22: #{tpu_custom_call.1} parent=5 // pred_check_branch
        %183 = sbr.rel (%p181) target = $region24
      $region23: #{tpu_custom_call.1} parent=5 // pred_region
        // Predicated region
        $region25: #{tpu_custom_call.1} parent=23 // pred_check
          %p184 = pneg %p53
        $region26: #{tpu_custom_call.1} parent=23 // pred_check_branch
          %186 = sbr.rel (%p184) target = $region28
        $region27: #{tpu_custom_call.1} parent=23 // pred_region
          %s187 = sand.u32 %s43, 1
          %s188 = scalar_lea.sflag [#allocation4], %s187
          %s189 = sand.u32 %s43, 1
          %s190 = smul.addr %s189, 16
          %s191 = scalar_lea.vmem [#allocation3], %s190
          %s193 = ssub.s32 256, 256
          %194 = vsyncadd %s188, %s193
          %s195 = smul.addr %s26, 8
          %s196 = sadd.s32 %s27, %s195
          %s197 = smul.addr %s196, 64
          %s198 = scalar_lea.hbm %s0, %s197
          %s199 = sshll.u32 %s191, 4
          %s200 = int_to_ptr.vmem [resolvable:$true] %s199
          %205 = dma.hbm_to_vmem [thread:$0]  %s198, 256, %s200, %s188, 128, 64, 4
        $region28: #{tpu_custom_call.1} parent=23 // pred_fallthru
          _
        // Predicated region
        $region29: #{tpu_custom_call.1} parent=23 // pred_check
          %p206 = pneg %p83
        $region30: #{tpu_custom_call.1} parent=23 // pred_check_branch
          %208 = sbr.rel (%p206) target = $region32
        $region31: #{tpu_custom_call.1} parent=23 // pred_region
          %s209 = sand.u32 %s73, 1
          %s210 = scalar_lea.sflag [#allocation7], %s209
          %s211 = sand.u32 %s73, 1
          %s212 = smul.addr %s211, 16
          %s213 = scalar_lea.vmem [#allocation6], %s212
          %s214 = sadd.s32 %s27, 1
          %s216 = ssub.s32 256, 256
          %217 = vsyncadd %s210, %s216
          %s218 = smul.addr %s26, 8
          %s219 = sadd.s32 %s214, %s218
          %s220 = smul.addr %s219, 64
          %s221 = scalar_lea.hbm %s1, %s220
          %s222 = sshll.u32 %s213, 4
          %s223 = int_to_ptr.vmem [resolvable:$true] %s222
          %228 = dma.hbm_to_vmem [thread:$0]  %s221, 256, %s223, %s210, 128, 64, 4
        $region32: #{tpu_custom_call.1} parent=23 // pred_fallthru
          _
      $region24: #{tpu_custom_call.1} parent=5 // pred_fallthru
        _
      %p229 = scmp.le.s32.totalorder 1, %s19
      %p230 = scmp.lt.s32.totalorder %s19, 3
      %p231 = pnand %p229, %p230
      %p232 = pneg %p231
      // Predicated region
      $region33: #{tpu_custom_call.1} parent=5 // pred_check
        _
      $region34: #{tpu_custom_call.1} parent=5 // pred_check_branch
        %234 = sbr.rel (%p231) target = $region36
      $region35: #{tpu_custom_call.1} parent=5 // pred_region
        %s235 = ssub.s32 %s19, 1
        %s236 = sand.u32 %s46, 1
        %s237 = scalar_lea.sflag [#allocation4], %s236
        %s238 = sand.u32 %s46, 1
        %s239 = smul.addr %s238, 16
        %s240 = scalar_lea.vmem [#allocation3], %s239
        // Predicated region
        $region37: #{tpu_custom_call.1} parent=35 // pred_check
          %p241 = pneg %p59
        $region38: #{tpu_custom_call.1} parent=35 // pred_check_branch
          %243 = sbr.rel (%p241) target = $region40
        $region39: #{tpu_custom_call.1} parent=35 // pred_region
          %244 = dma.done %s237, 256
        $region40: #{tpu_custom_call.1} parent=35 // pred_fallthru
          _
        %s245 = sand.u32 %s76, 1
        %s246 = scalar_lea.sflag [#allocation7], %s245
        %s247 = sand.u32 %s76, 1
        %s248 = smul.addr %s247, 16
        %s249 = scalar_lea.vmem [#allocation6], %s248
        // Predicated region
        $region41: #{tpu_custom_call.1} parent=35 // pred_check
          %p250 = pneg %p89
        $region42: #{tpu_custom_call.1} parent=35 // pred_check_branch
          %252 = sbr.rel (%p250) target = $region44
        $region43: #{tpu_custom_call.1} parent=35 // pred_region
          %253 = dma.done %s246, 256
        $region44: #{tpu_custom_call.1} parent=35 // pred_fallthru
          _
        %s254 = sand.u32 %s46, 1
        %s255 = scalar_lea.sflag [#allocation4], %s254
        %s256 = sand.u32 %s46, 1
        %s257 = smul.addr %s256, 16
        %s258 = scalar_lea.vmem [#allocation3], %s257
        %p259 = pneg %p59
        %p260 = pneg %p56
        %s261 = sand.u32 %s76, 1
        %s262 = scalar_lea.sflag [#allocation7], %s261
        %s263 = sand.u32 %s76, 1
        %s264 = smul.addr %s263, 16
        %s265 = scalar_lea.vmem [#allocation6], %s264
        %p266 = pneg %p89
        %p267 = pneg %p86
        %p268 = pneg %p110
        %p269 = pneg %p107
        %p270 = pneg %p131
        %p271 = pneg %p128
        %p272 = pneg %p159
        %p273 = pneg %p156
        %s274 = sand.u32 %s146, 1
        %s275 = scalar_lea.sflag [#allocation5], %s274
        %s276 = sand.u32 %s146, 1
        %s277 = smul.addr %s276, 32
        %s278 = scalar_lea.vmem [#allocation8], %s277
        %s279 = sadd.s32 %s29, 1
        %v281 = vld [vmem:[%s240] sm:$0xf]
        %v282 = vld [vmem:[%s240 + $0x4] sm:$0xf]
        %v285 = vunpack.c.l.b16 %v281
        %v286 = vunpack.c.l.b16 %v282
        %v287 = vpack.c.b16 %v286, %v285
        %289 = vst [vmem:[#allocation2] sm:$0xff] %v287
        %v290 = vld [vmem:[%s240] sm:$0xf]
        %v291 = vld [vmem:[%s240 + $0x4] sm:$0xf]
        %v292 = vld [vmem:[%s249] sm:$0xf]
        %v293 = vld [vmem:[%s249 + $0x4] sm:$0xf]
        %v296 = vunpack.c.l.b16 %v290
        %v297 = vunpack.c.l.b16 %v291
        %v298 = vpack.c.b16 %v297, %v296
        %299 = vrot.lane.b32.xlu0 %v298, 127
        %v300 = vpop.permute.xlu0 %299
        %v303 = vunpack.c.l.b16 %v292
        %v304 = vunpack.c.l.b16 %v293
        %v305 = vpack.c.b16 %v304, %v303
        %306 = vrot.lane.b32.xlu0 %v305, 127
        %v307 = vpop.permute.xlu0 %306
        %vm308 = vcmask 1039360
        %v311 = vsel %vm308, %v300, %v307
        %313 = vst [vmem:[#allocation2 + $0x8] sm:$0xff] %v311
        %v314 = vld [vmem:[%s240] sm:$0xf]
        %v315 = vld [vmem:[%s240 + $0x4] sm:$0xf]
        %v316 = vld [vmem:[%s249] sm:$0xf]
        %v317 = vld [vmem:[%s249 + $0x4] sm:$0xf]
        %v320 = vunpack.c.l.b16 %v314
        %v321 = vunpack.c.l.b16 %v315
        %v322 = vpack.c.b16 %v321, %v320
        %323 = vrot.lane.b32.xlu0 %v322, 126
        %v324 = vpop.permute.xlu0 %323
        %v327 = vunpack.c.l.b16 %v316
        %v328 = vunpack.c.l.b16 %v317
        %v329 = vpack.c.b16 %v328, %v327
        %330 = vrot.lane.b32.xlu0 %v329, 126
        %v331 = vpop.permute.xlu0 %330
        %vm332 = vcmask 1031168
        %v335 = vsel %vm332, %v324, %v331
        %337 = vst [vmem:[#allocation2 + $0x10] sm:$0xff] %v335
        %v338 = vld [vmem:[%s240] sm:$0xf]
        %v339 = vld [vmem:[%s240 + $0x4] sm:$0xf]
        %v340 = vld [vmem:[%s249] sm:$0xf]
        %v341 = vld [vmem:[%s249 + $0x4] sm:$0xf]
        %v344 = vunpack.c.l.b16 %v338
        %v345 = vunpack.c.l.b16 %v339
        %v346 = vpack.c.b16 %v345, %v344
        %347 = vrot.lane.b32.xlu0 %v346, 125
        %v348 = vpop.permute.xlu0 %347
        %v351 = vunpack.c.l.b16 %v340
        %v352 = vunpack.c.l.b16 %v341
        %v353 = vpack.c.b16 %v352, %v351
        %354 = vrot.lane.b32.xlu0 %v353, 125
        %v355 = vpop.permute.xlu0 %354
        %vm356 = vcmask 1022976
        %v359 = vsel %vm356, %v348, %v355
        %361 = vst [vmem:[#allocation2 + $0x18] sm:$0xff] %v359
        %v362 = vld [vmem:[%s240] sm:$0xf]
        %v363 = vld [vmem:[%s240 + $0x4] sm:$0xf]
        %v364 = vld [vmem:[%s249] sm:$0xf]
        %v365 = vld [vmem:[%s249 + $0x4] sm:$0xf]
        %v368 = vunpack.c.l.b16 %v362
        %v369 = vunpack.c.l.b16 %v363
        %v370 = vpack.c.b16 %v369, %v368
        %371 = vrot.lane.b32.xlu0 %v370, 124
        %v372 = vpop.permute.xlu0 %371
        %v375 = vunpack.c.l.b16 %v364
        %v376 = vunpack.c.l.b16 %v365
        %v377 = vpack.c.b16 %v376, %v375
        %378 = vrot.lane.b32.xlu0 %v377, 124
        %v379 = vpop.permute.xlu0 %378
        %vm380 = vcmask 1014784
        %v383 = vsel %vm380, %v372, %v379
        %385 = vst [vmem:[#allocation2 + $0x20] sm:$0xff] %v383
        %v386 = vld [vmem:[#allocation2] sm:$0xff]
        %v387 = vld [vmem:[#allocation2 + $0x8] sm:$0xff]
        %v388 = vld [vmem:[#allocation2 + $0x10] sm:$0xff]
        %v389 = vld [vmem:[#allocation2 + $0x18] sm:$0xff]
        %v390 = vld [vmem:[#allocation2 + $0x20] sm:$0xff]
        %v391 = vld [vmem:[%s2] sm:$0xf]
        %v392 = vld [vmem:[%s2 + $0x4] sm:$0xf]
        %v393 = vld [vmem:[%s3] sm:$0xff]
        %v394 = vld [vmem:[%s3 + $0x8] sm:$0xff]
        %396 = vset.pattern.permute.xlu0 0
        %397 = vperm.xlu0 %396, %v393
        %v398 = vpop.permute.xlu0 %397
        %401 = vset.pattern.permute.xlu0 0
        %402 = vperm.xlu0 %401, %v394
        %v403 = vpop.permute.xlu0 %402
        %v407 = vunpack.c.l.b16 %v391
        %v408 = vunpack.c.l.b16 %v392
        %v409 = vpack.c.b16 %v408, %v407
        %vm410 = vcmask 654336
        %v412 = vsel %vm410, %v409, 0
        %414 = vmatprep.subr.bf16.mxu0 0
        %415 = vmatpush1.bf16.msra.mxu0 %v386
        %416 = vmatprep.subr.bf16.mxu0 0
        %417 = vmatpush1.bf16.msra.mxu0 %v387
        %418 = vmatprep.subr.bf16.mxu0 0
        %419 = vmatpush1.bf16.msra.mxu0 %v388
        %420 = vmatprep.subr.bf16.mxu0 0
        %421 = vmatpush1.bf16.msra.mxu0 %v389
        %422 = vmatprep.subr.bf16.mxu0 0
        %423 = vmatpush1.bf16.msra.mxu0 %v390
        %424 = vmatprep.subr.bf16.mxu0 0
        %425 = vmatpush1.bf16.msra.mxu0 0
        %426 = vmatprep.subr.bf16.mxu0 0
        %427 = vmatpush1.bf16.msra.mxu0 0
        %428 = vmatprep.subr.bf16.mxu0 0
        %429 = vmatpush1.bf16.msra.mxu0 0
        %430 = vmatprep.subr.bf16.mxu0 0
        %431 = vmatpush1.bf16.msra.mxu0 0
        %432 = vmatprep.subr.bf16.mxu0 0
        %433 = vmatpush1.bf16.msra.mxu0 0
        %434 = vmatprep.subr.bf16.mxu0 0
        %435 = vmatpush1.bf16.msra.mxu0 0
        %436 = vmatprep.subr.bf16.mxu0 0
        %437 = vmatpush1.bf16.msra.mxu0 0
        %438 = vmatprep.subr.bf16.mxu0 0
        %439 = vmatpush1.bf16.msra.mxu0 0
        %440 = vmatprep.subr.bf16.mxu0 0
        %441 = vmatpush1.bf16.msra.mxu0 0
        %442 = vmatprep.subr.bf16.mxu0 0
        %443 = vmatpush1.bf16.msra.mxu0 0
        %444 = vmatprep.subr.bf16.mxu0 0
        %445 = vmatpush1.bf16.msra.mxu0 0
        %446 = vmatprep.mubr.bf16.mxu0 0
        %447 = vmatmul.mubr.bf16.gmra.mrb[0].mxu0 %v412
        %v448 = vpop.f32.mrb[0].mxu0
        %v449 = vadd.f32 %v398, %v448
        %v450 = vpop.f32.mrb[0].mxu0
        %v451 = vpop.f32.mrb[0].mxu0
        %v452 = vadd.f32 %v403, %v451
        %v453 = vpop.f32.mrb[0].mxu0
        %454 = vdwg.mxu0
        %v455 = vmul.f32 %v449, 0.5
        %v456 = vmul.f32 %v452, 0.5
        %v457 = vmul.f32 %v449, 0.70710677
        %v458 = vmul.f32 %v452, 0.70710677
        %vm459 = vcmp.lt.f32.partialorder %v457, 0.0
        %vm460 = vcmp.lt.f32.partialorder %v458, 0.0
        %v461 = vsel %vm459, -1.0, 1.0
        %v462 = vsel %vm460, -1.0, 1.0
        %v463 = vand.u32 2147483647, %v457
        %v464 = vand.u32 2147483647, %v458
        %v465 = vmul.f32 %v463, 0.3275911
        %v466 = vmul.f32 %v464, 0.3275911
        %v467 = vadd.f32 %v465, 1.0
        %v468 = vadd.f32 %v466, 1.0
        %v469 = vrcp.pop %v467
        %v470 = vmul.f32 1.0, %v469
        %v471 = vrcp.pop %v468
        %v472 = vmul.f32 1.0, %v471
        %v473 = vmul.f32 %v470, 1.0614054
        %v474 = vmul.f32 %v472, 1.0614054
        %v475 = vadd.f32 %v473, -1.4531521
        %v476 = vadd.f32 %v474, -1.4531521
        %v477 = vmul.f32 %v475, %v470
        %v478 = vmul.f32 %v476, %v472
        %v479 = vadd.f32 %v477, 1.4214138
        %v480 = vadd.f32 %v478, 1.4214138
        %v481 = vmul.f32 %v479, %v470
        %v482 = vmul.f32 %v480, %v472
        %v483 = vadd.f32 %v481, -0.28449672
        %v484 = vadd.f32 %v482, -0.28449672
        %v485 = vmul.f32 %v483, %v470
        %v486 = vmul.f32 %v484, %v472
        %v487 = vadd.f32 %v485, 0.2548296
        %v488 = vadd.f32 %v486, 0.2548296
        %v489 = vmul.f32 %v487, %v470
        %v490 = vmul.f32 %v488, %v472
        %v491 = vsub.f32 0.0, %v463
        %v492 = vsub.f32 0.0, %v464
        %v493 = vmul.f32 %v491, %v463
        %v494 = vmul.f32 %v492, %v464
        %v495 = vmul.f32 %v493, 1.442695
        %v496 = vpow.pop %v495
        %v497 = vmul.f32 %v494, 1.442695
        %v498 = vpow.pop %v497
        %v499 = vmul.f32 %v489, %v496
        %v500 = vmul.f32 %v490, %v498
        %v501 = vsub.f32 1.0, %v499
        %v502 = vsub.f32 1.0, %v500
        %v503 = vmul.f32 %v461, %v501
        %v504 = vmul.f32 %v462, %v502
        %v505 = vadd.f32 %v503, 1.0
        %v506 = vadd.f32 %v504, 1.0
        %v507 = vmul.f32 %v455, %v505
        %v508 = vmul.f32 %v456, %v506
        %509 = vst [vmem:[%s278] sm:$0xff] %v507
        %510 = vst [vmem:[%s278 + $0x8] sm:$0xff] %v508
        %v511 = vld [vmem:[%s240 + $0x8] sm:$0xf]
        %v512 = vld [vmem:[%s240 + $0xc] sm:$0xf]
        %v515 = vunpack.c.l.b16 %v511
        %v516 = vunpack.c.l.b16 %v512
        %v517 = vpack.c.b16 %v516, %v515
        %519 = vst [vmem:[#allocation2] sm:$0xff] %v517
        %v520 = vld [vmem:[%s240 + $0x8] sm:$0xf]
        %v521 = vld [vmem:[%s240 + $0xc] sm:$0xf]
        %v522 = vld [vmem:[%s249 + $0x8] sm:$0xf]
        %v523 = vld [vmem:[%s249 + $0xc] sm:$0xf]
        %v526 = vunpack.c.l.b16 %v520
        %v527 = vunpack.c.l.b16 %v521
        %v528 = vpack.c.b16 %v527, %v526
        %529 = vrot.lane.b32.xlu0 %v528, 127
        %v530 = vpop.permute.xlu0 %529
        %v533 = vunpack.c.l.b16 %v522
        %v534 = vunpack.c.l.b16 %v523
        %v535 = vpack.c.b16 %v534, %v533
        %536 = vrot.lane.b32.xlu0 %v535, 127
        %v537 = vpop.permute.xlu0 %536
        %v540 = vsel %vm308, %v530, %v537
        %542 = vst [vmem:[#allocation2 + $0x8] sm:$0xff] %v540
        %v543 = vld [vmem:[%s240 + $0x8] sm:$0xf]
        %v544 = vld [vmem:[%s240 + $0xc] sm:$0xf]
        %v545 = vld [vmem:[%s249 + $0x8] sm:$0xf]
        %v546 = vld [vmem:[%s249 + $0xc] sm:$0xf]
        %v549 = vunpack.c.l.b16 %v543
        %v550 = vunpack.c.l.b16 %v544
        %v551 = vpack.c.b16 %v550, %v549
        %552 = vrot.lane.b32.xlu0 %v551, 126
        %v553 = vpop.permute.xlu0 %552
        %v556 = vunpack.c.l.b16 %v545
        %v557 = vunpack.c.l.b16 %v546
        %v558 = vpack.c.b16 %v557, %v556
        %559 = vrot.lane.b32.xlu0 %v558, 126
        %v560 = vpop.permute.xlu0 %559
        %v563 = vsel %vm332, %v553, %v560
        %565 = vst [vmem:[#allocation2 + $0x10] sm:$0xff] %v563
        %v566 = vld [vmem:[%s240 + $0x8] sm:$0xf]
        %v567 = vld [vmem:[%s240 + $0xc] sm:$0xf]
        %v568 = vld [vmem:[%s249 + $0x8] sm:$0xf]
        %v569 = vld [vmem:[%s249 + $0xc] sm:$0xf]
        %v572 = vunpack.c.l.b16 %v566
        %v573 = vunpack.c.l.b16 %v567
        %v574 = vpack.c.b16 %v573, %v572
        %575 = vrot.lane.b32.xlu0 %v574, 125
        %v576 = vpop.permute.xlu0 %575
        %v579 = vunpack.c.l.b16 %v568
        %v580 = vunpack.c.l.b16 %v569
        %v581 = vpack.c.b16 %v580, %v579
        %582 = vrot.lane.b32.xlu0 %v581, 125
        %v583 = vpop.permute.xlu0 %582
        %v586 = vsel %vm356, %v576, %v583
        %588 = vst [vmem:[#allocation2 + $0x18] sm:$0xff] %v586
        %v589 = vld [vmem:[%s240 + $0x8] sm:$0xf]
        %v590 = vld [vmem:[%s240 + $0xc] sm:$0xf]
        %v591 = vld [vmem:[%s249 + $0x8] sm:$0xf]
        %v592 = vld [vmem:[%s249 + $0xc] sm:$0xf]
        %v595 = vunpack.c.l.b16 %v589
        %v596 = vunpack.c.l.b16 %v590
        %v597 = vpack.c.b16 %v596, %v595
        %598 = vrot.lane.b32.xlu0 %v597, 124
        %v599 = vpop.permute.xlu0 %598
        %v602 = vunpack.c.l.b16 %v591
        %v603 = vunpack.c.l.b16 %v592
        %v604 = vpack.c.b16 %v603, %v602
        %605 = vrot.lane.b32.xlu0 %v604, 124
        %v606 = vpop.permute.xlu0 %605
        %v609 = vsel %vm380, %v599, %v606
        %611 = vst [vmem:[#allocation2 + $0x20] sm:$0xff] %v609
        %v612 = vld [vmem:[#allocation2] sm:$0xff]
        %v613 = vld [vmem:[#allocation2 + $0x8] sm:$0xff]
        %v614 = vld [vmem:[#allocation2 + $0x10] sm:$0xff]
        %v615 = vld [vmem:[#allocation2 + $0x18] sm:$0xff]
        %v616 = vld [vmem:[#allocation2 + $0x20] sm:$0xff]
        %s617 = scalar_lea.vmem %s2, 8
        %v618 = vld [vmem:[%s617] sm:$0xf]
        %v619 = vld [vmem:[%s617 + $0x4] sm:$0xf]
        %v620 = vld [vmem:[%s3 + $0x10] sm:$0xff]
        %v621 = vld [vmem:[%s3 + $0x18] sm:$0xff]
        %623 = vset.pattern.permute.xlu0 0
        %624 = vperm.xlu0 %623, %v620
        %v625 = vpop.permute.xlu0 %624
        %628 = vset.pattern.permute.xlu0 0
        %629 = vperm.xlu0 %628, %v621
        %v630 = vpop.permute.xlu0 %629
        %v634 = vunpack.c.l.b16 %v618
        %v635 = vunpack.c.l.b16 %v619
        %v636 = vpack.c.b16 %v635, %v634
        %v638 = vsel %vm410, %v636, 0
        %640 = vmatprep.subr.bf16.mxu0 0
        %641 = vmatpush1.bf16.msra.mxu0 %v612
        %642 = vmatprep.subr.bf16.mxu0 0
        %643 = vmatpush1.bf16.msra.mxu0 %v613
        %644 = vmatprep.subr.bf16.mxu0 0
        %645 = vmatpush1.bf16.msra.mxu0 %v614
        %646 = vmatprep.subr.bf16.mxu0 0
        %647 = vmatpush1.bf16.msra.mxu0 %v615
        %648 = vmatprep.subr.bf16.mxu0 0
        %649 = vmatpush1.bf16.msra.mxu0 %v616
        %650 = vmatprep.subr.bf16.mxu0 0
        %651 = vmatpush1.bf16.msra.mxu0 0
        %652 = vmatprep.subr.bf16.mxu0 0
        %653 = vmatpush1.bf16.msra.mxu0 0
        %654 = vmatprep.subr.bf16.mxu0 0
        %655 = vmatpush1.bf16.msra.mxu0 0
        %656 = vmatprep.subr.bf16.mxu0 0
        %657 = vmatpush1.bf16.msra.mxu0 0
        %658 = vmatprep.subr.bf16.mxu0 0
        %659 = vmatpush1.bf16.msra.mxu0 0
        %660 = vmatprep.subr.bf16.mxu0 0
        %661 = vmatpush1.bf16.msra.mxu0 0
        %662 = vmatprep.subr.bf16.mxu0 0
        %663 = vmatpush1.bf16.msra.mxu0 0
        %664 = vmatprep.subr.bf16.mxu0 0
        %665 = vmatpush1.bf16.msra.mxu0 0
        %666 = vmatprep.subr.bf16.mxu0 0
        %667 = vmatpush1.bf16.msra.mxu0 0
        %668 = vmatprep.subr.bf16.mxu0 0
        %669 = vmatpush1.bf16.msra.mxu0 0
        %670 = vmatprep.subr.bf16.mxu0 0
        %671 = vmatpush1.bf16.msra.mxu0 0
        %672 = vmatprep.mubr.bf16.mxu0 0
        %673 = vmatmul.mubr.bf16.gmra.mrb[0].mxu0 %v638
        %v674 = vpop.f32.mrb[0].mxu0
        %v675 = vadd.f32 %v625, %v674
        %v676 = vpop.f32.mrb[0].mxu0
        %v677 = vpop.f32.mrb[0].mxu0
        %v678 = vadd.f32 %v630, %v677
        %v679 = vpop.f32.mrb[0].mxu0
        %680 = vdwg.mxu0
        %v681 = vmul.f32 %v675, 0.5
        %v682 = vmul.f32 %v678, 0.5
        %v683 = vmul.f32 %v675, 0.70710677
        %v684 = vmul.f32 %v678, 0.70710677
        %vm685 = vcmp.lt.f32.partialorder %v683, 0.0
        %vm686 = vcmp.lt.f32.partialorder %v684, 0.0
        %v687 = vsel %vm685, -1.0, 1.0
        %v688 = vsel %vm686, -1.0, 1.0
        %v689 = vand.u32 2147483647, %v683
        %v690 = vand.u32 2147483647, %v684
        %v691 = vmul.f32 %v689, 0.3275911
        %v692 = vmul.f32 %v690, 0.3275911
        %v693 = vadd.f32 %v691, 1.0
        %v694 = vadd.f32 %v692, 1.0
        %v695 = vrcp.pop %v693
        %v696 = vmul.f32 1.0, %v695
        %v697 = vrcp.pop %v694
        %v698 = vmul.f32 1.0, %v697
        %v699 = vmul.f32 %v696, 1.0614054
        %v700 = vmul.f32 %v698, 1.0614054
        %v701 = vadd.f32 %v699, -1.4531521
        %v702 = vadd.f32 %v700, -1.4531521
        %v703 = vmul.f32 %v701, %v696
        %v704 = vmul.f32 %v702, %v698
        %v705 = vadd.f32 %v703, 1.4214138
        %v706 = vadd.f32 %v704, 1.4214138
        %v707 = vmul.f32 %v705, %v696
        %v708 = vmul.f32 %v706, %v698
        %v709 = vadd.f32 %v707, -0.28449672
        %v710 = vadd.f32 %v708, -0.28449672
        %v711 = vmul.f32 %v709, %v696
        %v712 = vmul.f32 %v710, %v698
        %v713 = vadd.f32 %v711, 0.2548296
        %v714 = vadd.f32 %v712, 0.2548296
        %v715 = vmul.f32 %v713, %v696
        %v716 = vmul.f32 %v714, %v698
        %v717 = vsub.f32 0.0, %v689
        %v718 = vsub.f32 0.0, %v690
        %v719 = vmul.f32 %v717, %v689
        %v720 = vmul.f32 %v718, %v690
        %v721 = vmul.f32 %v719, 1.442695
        %v722 = vpow.pop %v721
        %v723 = vmul.f32 %v720, 1.442695
        %v724 = vpow.pop %v723
        %v725 = vmul.f32 %v715, %v722
        %v726 = vmul.f32 %v716, %v724
        %v727 = vsub.f32 1.0, %v725
        %v728 = vsub.f32 1.0, %v726
        %v729 = vmul.f32 %v687, %v727
        %v730 = vmul.f32 %v688, %v728
        %v731 = vadd.f32 %v729, 1.0
        %v732 = vadd.f32 %v730, 1.0
        %v733 = vmul.f32 %v681, %v731
        %v734 = vmul.f32 %v682, %v732
        %735 = vst [vmem:[%s278 + $0x10] sm:$0xff] %v733
        %736 = vst [vmem:[%s278 + $0x18] sm:$0xff] %v734
        %s737 = sand.u32 %s146, 1
        %s738 = scalar_lea.sflag [#allocation5], %s737
        %s739 = sand.u32 %s146, 1
        %s740 = smul.addr %s739, 32
        %s741 = scalar_lea.vmem [#allocation8], %s740
        // Predicated region
        $region45: #{tpu_custom_call.1} parent=35 // pred_check
          %p742 = pneg %p156
        $region46: #{tpu_custom_call.1} parent=35 // pred_check_branch
          %744 = sbr.rel (%p742) target = $region48
        $region47: #{tpu_custom_call.1} parent=35 // pred_region
          %s746 = ssub.s32 512, 512
          %747 = vsyncadd %s738, %s746
          %s748 = smul.addr %s28, 4
          %s749 = sadd.s32 %s29, %s748
          %s750 = smul.addr %s749, 128
          %s751 = scalar_lea.hbm %s4, %s750
          %s752 = sshll.u32 %s741, 4
          %s753 = int_to_ptr.vmem [resolvable:$true] %s752
          %758 = dma.vmem_to_hbm [thread:$0]  %s753, 512, %s751, %s738, 128, 128, 8
        $region48: #{tpu_custom_call.1} parent=35 // pred_fallthru
          _
      $region36: #{tpu_custom_call.1} parent=5 // pred_fallthru
        _
      %p759 = scmp.le.s32.totalorder 2, %s19
      // Predicated region
      $region49: #{tpu_custom_call.1} parent=5 // pred_check
        %p760 = pneg %p759
      $region50: #{tpu_custom_call.1} parent=5 // pred_check_branch
        %762 = sbr.rel (%p760) target = $region52
      $region51: #{tpu_custom_call.1} parent=5 // pred_region
        %s763 = ssub.s32 %s19, 2
        // Predicated region
        $region53: #{tpu_custom_call.1} parent=51 // pred_check
          %p764 = pneg %p162
        $region54: #{tpu_custom_call.1} parent=51 // pred_check_branch
          %766 = sbr.rel (%p764) target = $region56
        $region55: #{tpu_custom_call.1} parent=51 // pred_region
          %s767 = sand.u32 %s147, 1
          %s768 = scalar_lea.sflag [#allocation5], %s767
          %s769 = sand.u32 %s147, 1
          %s770 = smul.addr %s769, 32
          %s771 = scalar_lea.vmem [#allocation8], %s770
          %772 = dma.done %s768, 512
        $region56: #{tpu_custom_call.1} parent=51 // pred_fallthru
          _
      $region52: #{tpu_custom_call.1} parent=5 // pred_fallthru
        _
    $region6: #{tpu_custom_call.1} parent=1 // loop_footer
      %s23 = sadd.s32 1, %s19
    $region7: #{tpu_custom_call.1} parent=1 // loop_footer_branch
      %18 = sbr.rel target = $region3
    $region8: #{tpu_custom_call.1} parent=1 // loop_exit
      _
    %773 = vsyncpa [#allocation4], 1
    %s774 = scalar_lea.sflag [#allocation4], 1
    %775 = vsyncpa %s774, 1
    %776 = vsyncpa [#allocation7], 1
    %s777 = scalar_lea.sflag [#allocation7], 1
    %778 = vsyncpa %s777, 1
    %779 = vsyncpa [#allocation5], 1
    %s780 = scalar_lea.sflag [#allocation5], 1
    %781 = vsyncpa %s780, 1

</llo_original>
